<compile_context>
chip_gen: v6e
topology: v6e:2x2x1
jax: 0.10.0
libtpu: 0.0.40
codegen_flags: <defaults>
</compile_context>

<pallas_src>
import functools
import numpy as np
import jax
import jax.numpy as jnp
from jax.experimental import pallas as pl
from jax.experimental.pallas import tpu as pltpu


# ------------------------------ helpers --------------------------------------
def _round_up(x, m):
    return ((x + m - 1) // m) * m


def _cdiv(a, b):
    return (a + b - 1) // b


def _vmem_capacity_bytes():
    """Physical VMEM of the current chip; conservative fallback = v7x 64 MiB."""
    try:
        info = pltpu.get_tpu_info()
        cap = getattr(info, "vmem_capacity_bytes", None)
        if cap:
            return int(cap)
    except Exception:
        pass
    return 64 << 20


def _pick_reduction_tile(dim, cap):
    """Pick tk (multiple of 128, <= cap) minimising zero-padding of `dim`,
    preferring the largest tk among equal-padding candidates.
    Returns (tk, padded_dim)."""
    aligned = _round_up(dim, 128)
    if aligned <= cap:
        return aligned, aligned            # single K block → fast path
    best_tk, best_pad = 128, None
    t = cap - cap % 128
    while t >= 128:
        padded = _round_up(dim, t)
        if best_pad is None or padded < best_pad:
            best_pad, best_tk = padded, t
        t -= 128
    return best_tk, best_pad


def _vmem_limit_bytes(tm, x_block_k, tk, tn, multi_k):
    x_b = tm * x_block_k * 4          # x tile stays f32 in VMEM
    w_b = tk * tn * 2                 # bf16 weights
    b_b = tn * 4
    o_b = tm * tn * 4
    acc = tm * tn * 4 if multi_k else 0
    need = 2 * (x_b + w_b + b_b + o_b) + acc + (8 << 20)   # dbl-buffer + headroom
    cap = _vmem_capacity_bytes()
    return int(min(max(need, 16 << 20), (cap * 3) // 4))


# ----------------------------- Pallas kernels ---------------------------------
def _linear_kernel_single_k(x_ref, w_ref, b_ref, o_ref):
    # Whole reduction in one block: no accumulator scratch, no pl.when gating.
    x = x_ref[...].astype(jnp.bfloat16)
    o_ref[...] = (
        jnp.dot(x, w_ref[...], preferred_element_type=jnp.float32) + b_ref[...]
    ).astype(o_ref.dtype)


def _linear_kernel_multi_k(x_ref, w_ref, b_ref, o_ref, acc_ref, *, tk):
    k = pl.program_id(2)
    if x_ref.shape[1] == tk:                      # x streamed per-K-tile
        xb = x_ref[...]
    else:                                         # full-K resident x stripe
        xb = x_ref[:, pl.ds(pl.multiple_of(k * tk, 128), tk)]

    part = jnp.dot(xb.astype(jnp.bfloat16), w_ref[...],
                   preferred_element_type=jnp.float32)

    @pl.when(k == 0)
    def _():
        acc_ref[...] = part          # first step writes (no zero-fill pass)

    @pl.when(k > 0)
    def _():
        acc_ref[...] += part

    # Bias add + output store only once, in the K epilogue.
    @pl.when(k == pl.num_programs(2) - 1)
    def _():
        o_ref[...] = (acc_ref[...] + b_ref[...]).astype(o_ref.dtype)


def pallas_linear(x_p, w_t_p, b_p, out_features, *, tm, tk, tn):
    """y = x_p @ w_t_p + b_p restricted to the first `out_features` columns.

    x_p:   (M, Kp)  f32, Kp a multiple of tk (K zero-padded by the caller)
    w_t_p: (Kp, Np) bf16, Np = round_up(out_features, 128)
    b_p:   (1, Np)  f32
    Partial M / N blocks are masked by Pallas (no wrapper pad / slice passes).
    """
    M, Kp = x_p.shape
    Np = w_t_p.shape[1]
    grid_m = _cdiv(M, tm)
    grid_n = _cdiv(Np, tn)
    grid_k = Kp // tk

    cost = pl.CostEstimate(
        flops=2 * M * Kp * Np,
        transcendentals=0,
        bytes_accessed=4 * M * Kp + 2 * Kp * Np + 4 * Np + 4 * M * out_features,
    )

    if grid_k == 1:
        grid = (grid_m, grid_n)
        in_specs = [
            pl.BlockSpec((tm, Kp), lambda i, j: (i, 0)),   # x (full K)
            pl.BlockSpec((Kp, tn), lambda i, j: (0, j)),   # W^T tile
            pl.BlockSpec((1, tn), lambda i, j: (0, j)),    # bias tile
        ]
        out_spec = pl.BlockSpec((tm, tn), lambda i, j: (i, j))
        kernel = _linear_kernel_single_k
        scratch = []
        semantics = ("parallel", "parallel")
        vmem = _vmem_limit_bytes(tm, Kp, Kp, tn, multi_k=False)
    else:
        # Keep x's full K stripe resident per M block when it comfortably fits
        # in VMEM and there is more than one N tile (avoids re-streaming x
        # from HBM once per N tile).
        full_k_x = (grid_n > 1) and (tm * Kp * 4 <= (8 << 20))
        x_block_k = Kp if full_k_x else tk
        if full_k_x:
            x_spec = pl.BlockSpec((tm, Kp), lambda i, j, k: (i, 0))
        else:
            x_spec = pl.BlockSpec((tm, tk), lambda i, j, k: (i, k))
        grid = (grid_m, grid_n, grid_k)
        in_specs = [
            x_spec,
            pl.BlockSpec((tk, tn), lambda i, j, k: (k, j)),
            pl.BlockSpec((1, tn), lambda i, j, k: (0, j)),
        ]
        out_spec = pl.BlockSpec((tm, tn), lambda i, j, k: (i, j))
        kernel = functools.partial(_linear_kernel_multi_k, tk=tk)
        scratch = [pltpu.VMEM((tm, tn), jnp.float32)]
        semantics = ("parallel", "parallel", "arbitrary")
        vmem = _vmem_limit_bytes(tm, x_block_k, tk, tn, multi_k=True)

    return pl.pallas_call(
        kernel,
        out_shape=jax.ShapeDtypeStruct((M, out_features), x_p.dtype),
        grid_spec=pltpu.PrefetchScalarGridSpec(
            num_scalar_prefetch=0,
            grid=grid,
            in_specs=in_specs,
            out_specs=out_spec,
            scratch_shapes=scratch,
        ),
        compiler_params=pltpu.CompilerParams(
            dimension_semantics=semantics,
            vmem_limit_bytes=vmem,
        ),
        cost_estimate=cost,
    )(x_p, w_t_p, b_p)


# --------------------------- DNAS.Linear equivalent ---------------------------
def calc_seg_list(planes, n_seg, seg_sz):
    seg_sz_num = planes + n_seg - n_seg * seg_sz
    seg_sub_sz_num = n_seg - seg_sz_num
    seg_list = [seg_sz] * seg_sz_num + [seg_sz - 1] * seg_sub_sz_num
    return [sum(seg_list[: i + 1]) for i in range(n_seg)]


class DNASLinear:
    """JAX/Pallas port of utils/DNAS.py::Linear (forward pass only)."""

    def __init__(self, in_features, out_features, n_param=8, key=None):
        self.in_features = in_features
        self.out_features = out_features

        # split_type == 'fix_seg_size'
        in_seg_sz = n_param
        in_n_seg = int(np.ceil(in_features / n_param))
        self.seg_sz = n_param
        self.n_seg = int(np.ceil(out_features / n_param))

        self.in_plane_list = jnp.asarray(
            calc_seg_list(in_features, in_n_seg, in_seg_sz), dtype=jnp.float32
        )
        self.out_plane_list = calc_seg_list(out_features, self.n_seg, self.seg_sz)

        # mask / gate (not used in forward, kept for parity with the module)
        mask = np.zeros((out_features, self.n_seg), dtype=np.float32)
        for col in range(self.n_seg):
            mask[: self.out_plane_list[col], col] = 1.0
        self.mask = jnp.asarray(mask)
        self.gate = jnp.zeros((self.n_seg,), dtype=jnp.float32)  # assign_gate 'uniform'

        # Deterministic parameter init, mimicking torch.nn.Linear default
        # (uniform(-1/sqrt(in_features), 1/sqrt(in_features))).
        key = jax.random.PRNGKey(0) if key is None else key
        kw, kb = jax.random.split(key)
        bound = 1.0 / np.sqrt(in_features)
        self.weight = jax.random.uniform(
            kw, (out_features, in_features), jnp.float32, -bound, bound
        )
        self.bias = jax.random.uniform(
            kb, (out_features,), jnp.float32, -bound, bound
        )

        # ---- one-time, generation-aware layout prep ------------------------
        vmem_cap = _vmem_capacity_bytes()
        self._tm_max = 512
        self._tn_max = 512
        self._tk_max = 2048 if vmem_cap > (96 << 20) else 1024  # v5e/v6e vs v7x

        # K tile picked to bound zero-padding; N padded only to the next 128.
        self.tk, self.Kp = _pick_reduction_tile(in_features, self._tk_max)
        self.Np = _round_up(out_features, 128)
        self.tn_default = min(self._tn_max, self.Np)

        # bf16 weights, pre-transposed & zero-padded once (never per call).
        # TODO(synk): optional v7x fp8 weight path (per-channel scales) not implemented.
        w_t = self.weight.T                                       # (Cin, Cout)
        self.weight_t_p = jnp.pad(
            w_t, ((0, self.Kp - in_features), (0, self.Np - out_features))
        ).astype(jnp.bfloat16)
        self.bias_p = jnp.pad(
            self.bias, (0, self.Np - out_features)
        ).reshape(1, self.Np)                                     # f32

    def _cnt_flops(self, p_in):
        if p_in is None:
            cin_avg = jnp.float32(self.in_features)
        else:
            cin_avg = jnp.dot(p_in, self.in_plane_list)  # tiny reduction, plain JAX glue
        return cin_avg * self.out_features

    def forward(self, x, p_in=None):
        B, Cin = x.shape
        assert Cin == self.in_features

        # M tile: align to the 256-wide MXU when the batch allows; otherwise
        # round the (small) batch up to the sublane size only.
        b8 = _round_up(B, 8)
        if b8 >= self._tm_max:
            tm = self._tm_max
        elif b8 >= 256:
            tm = 256
        else:
            tm = b8

        tn = self.tn_default
        # Megacore: v7x has 2 TensorCores; make sure the parallel grid has at
        # least two blocks when the layer shape allows it.
        if _cdiv(B, tm) * _cdiv(self.Np, tn) < 2 and self.Np >= 256:
            tn = max(128, ((self.Np // 2) // 128) * 128)

        # Only the reduction axis needs explicit zero padding (garbage K would
        # feed the dot); partial M / N blocks are masked by Pallas.
        x_p = x if self.Kp == Cin else jnp.pad(x, ((0, 0), (0, self.Kp - Cin)))

        y = pallas_linear(
            x_p, self.weight_t_p, self.bias_p, self.out_features,
            tm=tm, tk=self.tk, tn=tn,
        )
        flops = self._cnt_flops(p_in)
        return y, flops


# ---------------------------------- demo --------------------------------------
if __name__ == "__main__":
    key = jax.random.PRNGKey(0)
    k_x, k_p, k_mod = jax.random.split(key, 3)

    B, IN_F, OUT_F = 8, 32, 64
    mod = DNASLinear(IN_F, OUT_F, n_param=8, key=k_mod)

    x = jax.random.normal(k_x, (B, IN_F), dtype=jnp.float32)

    # Case 1: p_in is None
    y, flops = mod.forward(x)
    y = jax.block_until_ready(y)
    flops = jax.block_until_ready(flops)

    # Case 2: with p_in (probability over input segments)
    logits = jax.random.normal(k_p, (mod.in_plane_list.shape[0],))
    p_in = jax.nn.softmax(logits)
    y2, flops2 = mod.forward(x, p_in)
    jax.block_until_ready((y2, flops2))

    # References:
    #  (a) tight check against the exact bf16-weight math the kernel performs,
    #  (b) loose check against full-f32 nn.Linear semantics.
    w_bf = mod.weight.astype(jnp.bfloat16).astype(jnp.float32)
    x_bf = x.astype(jnp.bfloat16).astype(jnp.float32)
    y_ref_bf16 = x_bf @ w_bf.T + mod.bias
    y_ref_f32 = x @ mod.weight.T + mod.bias

    assert y.shape == (B, OUT_F), "output shape mismatch"
    assert jnp.allclose(y, y_ref_bf16, atol=1e-4, rtol=1e-4), "kernel mismatch vs bf16 ref"
    assert jnp.allclose(y, y_ref_f32, atol=1e-1, rtol=1e-1), "kernel deviates from f32 ref"
    assert jnp.allclose(flops, IN_F * OUT_F), "flops (p_in=None) mismatch"
    assert jnp.allclose(
        flops2, jnp.dot(p_in, mod.in_plane_list) * OUT_F
    ), "flops (p_in) mismatch"

    print("KERNEL_OK")
</pallas_src>

<mosaic_0001>
module attributes {stable_mosaic.version = 11 : i64} {
  func.func @_linear_kernel_single_k(%arg0: i32, %arg1: i32, %arg2: memref<8x128xf32, #tpu.memory_space<vmem>>, %arg3: memref<128x128xbf16, #tpu.memory_space<vmem>>, %arg4: memref<1x128xf32, #tpu.memory_space<vmem>>, %arg5: memref<8x128xf32, #tpu.memory_space<vmem>>) attributes {dimension_semantics = [#tpu.dimension_semantics<parallel>, #tpu.dimension_semantics<parallel>], iteration_bounds = array<i64: 1, 1>, scalar_prefetch = 0 : i64, scratch_operands = 0 : i64, tpu.core_type = #tpu.core_type<tc>, window_params = [{transform_indices = @transform_0, window_bounds = array<i64: 8, 128>}, {transform_indices = @transform_1, window_bounds = array<i64: 128, 128>}, {transform_indices = @transform_2, window_bounds = array<i64: 1, 128>}, {transform_indices = @transform_3, window_bounds = array<i64: 8, 128>}]} {
    %c0 = arith.constant 0 : index
    %c0_0 = arith.constant 0 : index
    %0 = vector.load %arg2[%c0, %c0_0] : memref<8x128xf32, #tpu.memory_space<vmem>>, vector<8x128xf32>
    %1 = arith.truncf %0 : vector<8x128xf32> to vector<8x128xbf16>
    %c0_1 = arith.constant 0 : index
    %c0_2 = arith.constant 0 : index
    %2 = vector.load %arg3[%c0_1, %c0_2] : memref<128x128xbf16, #tpu.memory_space<vmem>>, vector<128x128xbf16>
    %cst = arith.constant dense<0.000000e+00> : vector<8x128xf32>
    %3 = tpu.matmul %1, %2, %cst {dimension_numbers = #tpu.dot_dimension_numbers<[1], [0], [0], [1], [0, 0, 1, 1], [], []>} : vector<8x128xbf16>, vector<128x128xbf16>, vector<8x128xf32> -> vector<8x128xf32>
    %c0_3 = arith.constant 0 : index
    %c0_4 = arith.constant 0 : index
    %4 = vector.load %arg4[%c0_3, %c0_4] : memref<1x128xf32, #tpu.memory_space<vmem>>, vector<1x128xf32>
    %5 = vector.broadcast %4 : vector<1x128xf32> to vector<8x128xf32>
    %6 = arith.addf %3, %5 : vector<8x128xf32>
    %c0_5 = arith.constant 0 : index
    %c0_6 = arith.constant 0 : index
    %7 = vector.load %arg5[%c0_5, %c0_6] : memref<8x128xf32, #tpu.memory_space<vmem>>, vector<8x128xf32>
    tpu.vector_store %arg5[%c0_5, %c0_6], %6 {strides = array<i32>} : memref<8x128xf32, #tpu.memory_space<vmem>>, vector<8x128xf32>,
    return
  }
  func.func @transform_0(%arg0: i32, %arg1: i32) -> (i32, i32) {
    %c0_i32 = arith.constant 0 : i32
    %c0_i32_0 = arith.constant 0 : i32
    return %arg0, %c0_i32 : i32, i32
  }
  func.func @transform_1(%arg0: i32, %arg1: i32) -> (i32, i32) {
    %c0_i32 = arith.constant 0 : i32
    %c0_i32_0 = arith.constant 0 : i32
    return %c0_i32, %arg1 : i32, i32
  }
  func.func @transform_2(%arg0: i32, %arg1: i32) -> (i32, i32) {
    %c0_i32 = arith.constant 0 : i32
    %c0_i32_0 = arith.constant 0 : i32
    return %c0_i32, %arg1 : i32, i32
  }
  func.func @transform_3(%arg0: i32, %arg1: i32) -> (i32, i32) {
    %c0_i32 = arith.constant 0 : i32
    return %arg0, %arg1 : i32, i32
  }
}

</mosaic_0001>

<llo_original>
// kernel: tpu_custom_call.1
$region0: #{tpu_custom_call.1}
  #allocation0 [shape = 'u32[]', space=smem, size = 0x4, offset = 0x4, fixed_abs, tag = 'smem constant byte address 0x4 - core index']
  #allocation1 [shape = 'u32[144,128]{1,0:T(1,128)}', space=vmem, size = 0x12000, scoped, tag = 'internal scratch']
  %s0 = inlined_call_operand.hbm [shape: f32[8,128], index: 0, kind: input, shape index: {}]
  %s1 = inlined_call_operand.hbm [shape: bf16[128,128], index: 1, kind: input, shape index: {}]
  %s2 = inlined_call_operand.vmem [shape: f32[1,128], index: 2, kind: input, shape index: {}]
  %s3 = inlined_call_operand.hbm [shape: f32[8,64], index: 3, kind: output, shape index: {}]
  %s4 = sld [smem:[#allocation0]]
  $region30: #{tpu_custom_call.1} parent=0
    _
  %s6 = ssub.s32 1, %s4
  %s7 = scalar_select 0, %s6, %s4
  $region1: #{tpu_custom_call.1} parent=0
    #allocation2 [shape = 'u8[4096]{0}', space=vmem, size = 0x1000, scoped, tag = 'input window, operand 0, single buffered']
    #allocation3 [shape = 's32[1]{0}', space=sflag, size = 0x4, scoped, tag = 'scoped memory for tpu_custom_call.1']
    #allocation4 [shape = 's32[1]{0}', space=sflag, size = 0x4, scoped, tag = 'scoped memory for tpu_custom_call.1']
    #allocation5 [shape = 'u8[32768]{0}', space=vmem, size = 0x8000, scoped, tag = 'input window, operand 1, single buffered']
    #allocation6 [shape = 's32[1]{0}', space=sflag, size = 0x4, scoped, tag = 'scoped memory for tpu_custom_call.1']
    #allocation7 [shape = 'u8[4096]{0}', space=vmem, size = 0x1000, scoped, tag = 'output window, operand 0, single buffered']
    %8 = vsyncpa [#allocation3], 0
    %9 = vsyncpa [#allocation6], 0
    %10 = vsyncpa [#allocation4], 0
    // Predicated region
    $region2: #{tpu_custom_call.1} parent=1 // pred_check
      _
    $region3: #{tpu_custom_call.1} parent=1 // pred_check_branch
      %12 = sbr.rel (0) target = $region5
    $region4: #{tpu_custom_call.1} parent=1 // pred_region
      %s14 = ssub.s32 128, 128
      %15 = vsyncadd [#allocation3], %s14
      %s17 = sshll.u32 [#allocation2], 4
      %s18 = int_to_ptr.vmem [resolvable:$true] %s17
      %20 = dma.hbm_to_vmem [thread:$0]  %s0, 128, %s18, [#allocation3]
    $region5: #{tpu_custom_call.1} parent=1 // pred_fallthru
      _
    // Predicated region
    $region6: #{tpu_custom_call.1} parent=1 // pred_check
      _
    $region7: #{tpu_custom_call.1} parent=1 // pred_check_branch
      %22 = sbr.rel (0) target = $region9
    $region8: #{tpu_custom_call.1} parent=1 // pred_region
      %s24 = ssub.s32 1024, 1024
      %25 = vsyncadd [#allocation6], %s24
      %s26 = sshll.u32 [#allocation5], 4
      %s27 = int_to_ptr.vmem [resolvable:$true] %s26
      %32 = dma.hbm_to_vmem [thread:$0]  %s1, 1024, %s27, [#allocation6], 64, 64, 4
    $region9: #{tpu_custom_call.1} parent=1 // pred_fallthru
      _
    // Predicated region
    $region10: #{tpu_custom_call.1} parent=1 // pred_check
      _
    $region11: #{tpu_custom_call.1} parent=1 // pred_check_branch
      %34 = sbr.rel (0) target = $region13
    $region12: #{tpu_custom_call.1} parent=1 // pred_region
      _
    $region13: #{tpu_custom_call.1} parent=1 // pred_fallthru
      _
    // Predicated region
    $region14: #{tpu_custom_call.1} parent=1 // pred_check
      _
    $region15: #{tpu_custom_call.1} parent=1 // pred_check_branch
      %36 = sbr.rel (0) target = $region17
    $region16: #{tpu_custom_call.1} parent=1 // pred_region
      %37 = dma.done [#allocation3], 128
    $region17: #{tpu_custom_call.1} parent=1 // pred_fallthru
      _
    // Predicated region
    $region18: #{tpu_custom_call.1} parent=1 // pred_check
      _
    $region19: #{tpu_custom_call.1} parent=1 // pred_check_branch
      %39 = sbr.rel (0) target = $region21
    $region20: #{tpu_custom_call.1} parent=1 // pred_region
      %40 = dma.done [#allocation6], 1024
    $region21: #{tpu_custom_call.1} parent=1 // pred_fallthru
      _
    %v42 = vld [vmem:[#allocation2] sm:$0xff]
    %v43 = vpack.c.bf16 %v42, %v42
    %v44 = vld [vmem:[#allocation5] sm:$0xf]
    %v45 = vld [vmem:[#allocation5 + $0x4] sm:$0xf]
    %v46 = vld [vmem:[#allocation5 + $0x8] sm:$0xf]
    %v47 = vld [vmem:[#allocation5 + $0xc] sm:$0xf]
    %v48 = vld [vmem:[#allocation5 + $0x10] sm:$0xf]
    %v49 = vld [vmem:[#allocation5 + $0x14] sm:$0xf]
    %v50 = vld [vmem:[#allocation5 + $0x18] sm:$0xf]
    %v51 = vld [vmem:[#allocation5 + $0x1c] sm:$0xf]
    %v52 = vld [vmem:[#allocation5 + $0x20] sm:$0xf]
    %v53 = vld [vmem:[#allocation5 + $0x24] sm:$0xf]
    %v54 = vld [vmem:[#allocation5 + $0x28] sm:$0xf]
    %v55 = vld [vmem:[#allocation5 + $0x2c] sm:$0xf]
    %v56 = vld [vmem:[#allocation5 + $0x30] sm:$0xf]
    %v57 = vld [vmem:[#allocation5 + $0x34] sm:$0xf]
    %v58 = vld [vmem:[#allocation5 + $0x38] sm:$0xf]
    %v59 = vld [vmem:[#allocation5 + $0x3c] sm:$0xf]
    %v60 = vld [vmem:[%s2] sm:$0x1]
    %v62 = vlaneseq
    %v63 = vshrl.u32 %v62, 7
    %v64 = vsub.s32 0, %v63
    %v65 = vrot.slane %v60, %v64
    %v83 = vunpack.c.l.b16 %v44
    %v84 = vunpack.c.l.b16 %v45
    %v85 = vunpack.c.l.b16 %v46
    %v86 = vunpack.c.l.b16 %v47
    %v87 = vunpack.c.l.b16 %v48
    %v88 = vunpack.c.l.b16 %v49
    %v89 = vunpack.c.l.b16 %v50
    %v90 = vunpack.c.l.b16 %v51
    %v91 = vunpack.c.l.b16 %v52
    %v92 = vunpack.c.l.b16 %v53
    %v93 = vunpack.c.l.b16 %v54
    %v94 = vunpack.c.l.b16 %v55
    %v95 = vunpack.c.l.b16 %v56
    %v96 = vunpack.c.l.b16 %v57
    %v97 = vunpack.c.l.b16 %v58
    %v98 = vunpack.c.l.b16 %v59
    %v99 = vpack.c.b16 %v84, %v83
    %v100 = vpack.c.b16 %v86, %v85
    %v101 = vpack.c.b16 %v88, %v87
    %v102 = vpack.c.b16 %v90, %v89
    %v103 = vpack.c.b16 %v92, %v91
    %v104 = vpack.c.b16 %v94, %v93
    %v105 = vpack.c.b16 %v96, %v95
    %v106 = vpack.c.b16 %v98, %v97
    %115 = vmatprep.subr.bf16.mxu0 0
    %116 = vmatpush1.bf16.msra.mxu0 %v106
    %117 = vmatprep.subr.bf16.mxu0 0
    %118 = vmatpush1.bf16.msra.mxu0 %v105
    %119 = vmatprep.subr.bf16.mxu0 0
    %120 = vmatpush1.bf16.msra.mxu0 %v104
    %121 = vmatprep.subr.bf16.mxu0 0
    %122 = vmatpush1.bf16.msra.mxu0 %v103
    %123 = vmatprep.subr.bf16.mxu0 0
    %124 = vmatpush1.bf16.msra.mxu0 %v102
    %125 = vmatprep.subr.bf16.mxu0 0
    %126 = vmatpush1.bf16.msra.mxu0 %v101
    %127 = vmatprep.subr.bf16.mxu0 0
    %128 = vmatpush1.bf16.msra.mxu0 %v100
    %129 = vmatprep.subr.bf16.mxu0 0
    %130 = vmatpush1.bf16.msra.mxu0 %v99
    %131 = vmatprep.subr.bf16.mxu0 0
    %132 = vmatpush2.bf16.msra.mxu0 0
    %133 = vmatprep.subr.bf16.mxu0 0
    %134 = vmatpush2.bf16.msra.mxu0 0
    %135 = vmatprep.subr.bf16.mxu0 0
    %136 = vmatpush2.bf16.msra.mxu0 0
    %137 = vmatprep.subr.bf16.mxu0 0
    %138 = vmatpush2.bf16.msra.mxu0 0
    %139 = vmatprep.subr.bf16.mxu0 0
    %140 = vmatpush2.bf16.msra.mxu0 0
    %141 = vmatprep.subr.bf16.mxu0 0
    %142 = vmatpush2.bf16.msra.mxu0 0
    %143 = vmatprep.subr.bf16.mxu0 0
    %144 = vmatpush2.bf16.msra.mxu0 0
    %145 = vmatprep.subr.bf16.mxu0 0
    %146 = vmatpush2.bf16.msra.mxu0 0
    %147 = vmatprep.mubr.bf16.mxu0 0
    %148 = vmatmul.mubr.bf16.gmra.mxu0 %v43
    %v149 = vpop.f32.mrf.mxu0
    %v150 = vadd.f32 %v65, %v149
    %v151 = vpop.f32.mrf.mxu0
    %v152 = vpop.f32.mrf.mxu0
    %v153 = vpop.f32.mrf.mxu0
    %154 = vdwg.mxu0
    %155 = vst [vmem:[#allocation7] sm:$0xff] %v150
    // Predicated region
    $region22: #{tpu_custom_call.1} parent=1 // pred_check
      _
    $region23: #{tpu_custom_call.1} parent=1 // pred_check_branch
      %157 = sbr.rel (0) target = $region25
    $region24: #{tpu_custom_call.1} parent=1 // pred_region
      %s159 = ssub.s32 128, 128
      %160 = vsyncadd [#allocation4], %s159
      %s162 = sshll.u32 [#allocation7], 4
      %s163 = int_to_ptr.vmem [resolvable:$true] %s162
      %165 = dma.vmem_to_hbm [thread:$0]  %s163, 128, %s3, [#allocation4]
    $region25: #{tpu_custom_call.1} parent=1 // pred_fallthru
      _
    // Predicated region
    $region26: #{tpu_custom_call.1} parent=1 // pred_check
      _
    $region27: #{tpu_custom_call.1} parent=1 // pred_check_branch
      %167 = sbr.rel (0) target = $region29
    $region28: #{tpu_custom_call.1} parent=1 // pred_region
      %168 = dma.done [#allocation4], 128
    $region29: #{tpu_custom_call.1} parent=1 // pred_fallthru
      _
    %169 = vsyncpa [#allocation3], 1
    %170 = vsyncpa [#allocation6], 1
    %171 = vsyncpa [#allocation4], 1

</llo_original>
